<compile_context>
chip_gen: v7x
topology: tpu7x:2x2x1
jax: 0.10.0
libtpu: 0.0.40
codegen_flags: <defaults>
</compile_context>

<pallas_src>
import functools
import math

import jax
import jax.numpy as jnp
from jax.experimental import pallas as pl
from jax.experimental.pallas import tpu as pltpu

ALPHA = 0.8
GAMMA = 2.0          # baked in as a plain square below (no jnp.power)
CLASS_WEIGHT = 10.0
LANES = 128
SUBLANES = 8


def _focal_kernel(x_ref, t_ref, out_ref, *, tile_rows, valid_in_last, hard_targets):
    """One grid step: elementwise focal loss on a (tile_rows, 128) tile,
    reduced to a single vreg-shaped (8, 128) partial sum (pure VPU adds)."""

    def tile_loss():
        x = x_ref[...].astype(jnp.float32)
        t_raw = t_ref[...]
        # targets > 0.5 in the native dtype (no f32 cast needed for the compare)
        t_pos = t_raw > 0.5
        # alpha folded into the class weight: {alpha, alpha*class_weight}
        w = jnp.where(t_pos, jnp.float32(ALPHA * CLASS_WEIGHT), jnp.float32(ALPHA))

        if hard_targets:
            # Exact for {0,1} labels only. 1 exp + 1 log1p + 1 approx-recip (EUP).
            z = jnp.where(t_pos, x, -x)               # z = (2t - 1) * x
            e = jnp.exp(-jnp.abs(x))                  # == exp(-|z|)
            bce = jnp.maximum(-z, 0.0) + jnp.log1p(e)
            inv = pl.reciprocal(1.0 + e, approx=True)
            pt = jnp.where(z >= 0, inv, e * inv)      # sigmoid(z) == exp(-bce)
        else:
            # General (soft-label safe) path; matches
            # F.binary_cross_entropy_with_logits. 2 exp + 1 log1p (EUP).
            t = t_raw.astype(jnp.float32)
            bce = jnp.maximum(x, 0.0) - x * t + jnp.log1p(jnp.exp(-jnp.abs(x)))
            pt = jnp.exp(-bce)

        one_minus_pt = 1.0 - pt
        return w * (one_minus_pt * one_minus_pt) * bce   # gamma == 2

    def write_partial(loss):
        out_ref[...] = loss.reshape(tile_rows // SUBLANES, SUBLANES, LANES).sum(axis=0)

    if valid_in_last == tile_rows * LANES:
        # Every block (including the last) is fully valid: no mask anywhere.
        write_partial(tile_loss())
    else:
        i = pl.program_id(0)
        last = pl.num_programs(0) - 1

        @pl.when(i != last)
        def _():
            # Steady-state fast path: no iota / compare / select per element.
            write_partial(tile_loss())

        @pl.when(i == last)
        def _():
            # Final block only: mask lane padding and Pallas edge-block garbage.
            # valid_in_last is static, so the mask is just scalar compares
            # against iotas (no per-element int32 multiplies).
            loss = tile_loss()
            row = jax.lax.broadcasted_iota(jnp.int32, (tile_rows, LANES), 0)
            full_rows = valid_in_last // LANES
            rem = valid_in_last % LANES
            if rem == 0:
                valid = row < full_rows
            else:
                lane = jax.lax.broadcasted_iota(jnp.int32, (tile_rows, LANES), 1)
                valid = (row < full_rows) | ((row == full_rows) & (lane < rem))
            write_partial(jnp.where(valid, loss, 0.0))


def _vmem_limit_bytes():
    """Generation-aware scoped-VMEM limit: ~half of physical per-core VMEM."""
    try:
        cap = int(pltpu.get_tpu_info().vmem_capacity_bytes)
    except Exception:  # interpret mode / unknown chip -> conservative default
        cap = 128 * 1024 * 1024
    return max(32 * 1024 * 1024, min(cap // 2, 64 * 1024 * 1024))


def focal_loss(inputs, targets, *, reduction="mean", hard_targets=False,
               tile_rows=4096):
    """Binary focal loss with class weighting (alpha=0.8, gamma=2, class_weight=10).

    inputs/targets: identical shapes (e.g. NCHW logits / labels). Caller-side:
    keep targets in a narrow dtype (bf16/int8) in HBM when the producer allows
    it -- the kernel casts on the VPU, and a narrower target stream directly
    cuts HBM traffic. `hard_targets=True` enables a cheaper transcendental
    path that is exact only for {0, 1} labels.
    """
    assert inputs.shape == targets.shape
    assert GAMMA == 2.0, "kernel bakes gamma == 2 in as a plain square"
    n_elem = math.prod(inputs.shape)

    # Keep native dtype; the f32 cast happens on the VPU inside the kernel.
    x = jnp.ravel(inputs)
    t = jnp.ravel(targets)

    rem = n_elem % LANES
    if rem:
        # TODO(synk): this jnp.pad materializes a full copy of both inputs for
        # lane-unaligned sizes; a 1-D BlockSpec (tr*128,) + in-kernel reshape
        # would avoid the extra HBM pass but relies on Mosaic's 1-D->2-D
        # relayout. Lane-aligned inputs (the common case) take no copy.
        pad = LANES - rem
        x = jnp.pad(x, (0, pad))
        t = jnp.pad(t, (0, pad))
    rows = x.shape[0] // LANES
    x = x.reshape(rows, LANES)
    t = t.reshape(rows, LANES)

    # Tile sizing: as large as possible (amortize per-step overhead), but
    # capped so big inputs still yield >= ~8 blocks (2nd TensorCore on v7x),
    # and a multiple of 16 sublanes so bf16 inputs also tile cleanly.
    tr = min(tile_rows, 16 * pl.cdiv(pl.cdiv(rows, 8), 16))
    tr = max(16, 16 * pl.cdiv(tr, 16))
    grid_n = pl.cdiv(rows, tr)
    # Number of real (unmasked) elements covered by the final grid block.
    valid_in_last = n_elem - (grid_n - 1) * tr * LANES

    in_spec = pl.BlockSpec((tr, LANES), lambda i: (i, 0))
    # Leading dim of size 1 squeezed away -> kernel writes an (8, 128) block.
    out_spec = pl.BlockSpec((None, SUBLANES, LANES), lambda i: (i, 0, 0))

    kernel = functools.partial(
        _focal_kernel, tile_rows=tr, valid_in_last=valid_in_last,
        hard_targets=hard_targets)

    partials = pl.pallas_call(
        kernel,
        out_shape=jax.ShapeDtypeStruct((grid_n, SUBLANES, LANES), jnp.float32),
        grid=(grid_n,),
        in_specs=[in_spec, in_spec],
        out_specs=out_spec,
        compiler_params=pltpu.CompilerParams(
            # Per-block partial outputs -> no resident accumulator -> the grid
            # axis is genuinely parallel (megacore / 2nd TC on v7x).
            dimension_semantics=("parallel",),
            vmem_limit_bytes=_vmem_limit_bytes(),
        ),
    )(x, t)

    # Tiny final cross-lane reduction (outside the kernel).
    total = jnp.sum(partials)
    if reduction == "mean":
        return total / jnp.float32(n_elem)
    if reduction == "sum":
        return total
    # TODO(synk): reduction='none' needs a per-element output kernel; not implemented.
    raise NotImplementedError("reduction='none' is not implemented in the Pallas kernel")


def focal_loss_ref(inputs, targets):
    x = inputs.astype(jnp.float32)
    t = targets.astype(jnp.float32)
    bce = jnp.maximum(x, 0.0) - x * t + jnp.log1p(jnp.exp(-jnp.abs(x)))
    w = jnp.where(t > 0.5, CLASS_WEIGHT, 1.0)
    pt = jnp.exp(-bce)
    focal = ALPHA * (1.0 - pt) ** GAMMA
    return jnp.mean(w * focal * bce)


if __name__ == "__main__":
    key = jax.random.PRNGKey(0)
    k1, k2, k3, k4 = jax.random.split(key, 4)

    # 1) lane-aligned NCHW case (2*4*16*16 = 2048 elements), general path
    logits = jax.random.normal(k1, (2, 4, 16, 16), dtype=jnp.float32) * 2.0
    targets = (jax.random.uniform(k2, (2, 4, 16, 16)) > 0.7).astype(jnp.float32)
    out = jax.block_until_ready(focal_loss(logits, targets))
    ref = focal_loss_ref(logits, targets)
    assert jnp.allclose(out, ref, rtol=1e-5, atol=1e-5), ("aligned", out, ref)

    # 2) lane-unaligned case (2*3*33*33 = 6534 elements) -> exercises the
    #    masked final block (lane padding + ragged grid edge rows)
    logits_u = jax.random.normal(k3, (2, 3, 33, 33), dtype=jnp.float32) * 2.0
    targets_u = (jax.random.uniform(k4, (2, 3, 33, 33)) > 0.6).astype(jnp.float32)
    out_u = jax.block_until_ready(focal_loss(logits_u, targets_u))
    ref_u = focal_loss_ref(logits_u, targets_u)
    assert jnp.allclose(out_u, ref_u, rtol=1e-5, atol=1e-5), ("unaligned", out_u, ref_u)

    # 3) hard-label fast path (exact for 0/1 targets; approx recip -> looser tol)
    out_h = jax.block_until_ready(focal_loss(logits, targets, hard_targets=True))
    assert jnp.allclose(out_h, ref, rtol=1e-2, atol=1e-3), ("hard", out_h, ref)

    print("KERNEL_OK")
</pallas_src>

<mosaic_0001>
module attributes {stable_mosaic.version = 11 : i64} {
  func.func @_focal_kernel(%arg0: i32, %arg1: memref<16x128xf32, #tpu.memory_space<vmem>>, %arg2: memref<16x128xf32, #tpu.memory_space<vmem>>, %arg3: memref<1x8x128xf32, #tpu.memory_space<vmem>>) attributes {dimension_semantics = [#tpu.dimension_semantics<parallel>], iteration_bounds = array<i64: 1>, scalar_prefetch = 0 : i64, scratch_operands = 0 : i64, tpu.core_type = #tpu.core_type<tc>, window_params = [{transform_indices = @transform_0, window_bounds = array<i64: 16, 128>}, {transform_indices = @transform_1, window_bounds = array<i64: 16, 128>}, {transform_indices = @transform_2, window_bounds = array<i64: 1, 8, 128>}]} {
    %c0 = arith.constant 0 : index
    %c0_0 = arith.constant 0 : index
    %0 = vector.load %arg1[%c0, %c0_0] : memref<16x128xf32, #tpu.memory_space<vmem>>, vector<16x128xf32>
    %c0_1 = arith.constant 0 : index
    %c0_2 = arith.constant 0 : index
    %1 = vector.load %arg2[%c0_1, %c0_2] : memref<16x128xf32, #tpu.memory_space<vmem>>, vector<16x128xf32>
    %cst = arith.constant 5.000000e-01 : f32
    %2 = vector.broadcast %cst : f32 to vector<16x128xf32>
    %3 = arith.cmpf ogt, %1, %2 : vector<16x128xf32>
    %cst_3 = arith.constant 8.000000e+00 : f32
    %cst_4 = arith.constant 8.000000e-01 : f32
    %4 = vector.broadcast %cst_3 : f32 to vector<16x128xf32>
    %5 = vector.broadcast %cst_4 : f32 to vector<16x128xf32>
    %6 = arith.select %3, %4, %5 : vector<16x128xi1>, vector<16x128xf32>
    %cst_5 = arith.constant 0.000000e+00 : f32
    %7 = vector.broadcast %cst_5 : f32 to vector<16x128xf32>
    %8 = arith.maximumf %0, %7 : vector<16x128xf32>
    %9 = arith.mulf %0, %1 : vector<16x128xf32>
    %10 = arith.subf %8, %9 : vector<16x128xf32>
    %11 = math.absf %0 : vector<16x128xf32>
    %cst_6 = arith.constant 0.000000e+00 : f32
    %12 = vector.broadcast %cst_6 : f32 to vector<16x128xf32>
    %13 = arith.subf %12, %11 : vector<16x128xf32>
    %14 = math.exp %13 : vector<16x128xf32>
    %15 = math.log1p %14 : vector<16x128xf32>
    %16 = arith.addf %10, %15 : vector<16x128xf32>
    %cst_7 = arith.constant 0.000000e+00 : f32
    %17 = vector.broadcast %cst_7 : f32 to vector<16x128xf32>
    %18 = arith.subf %17, %16 : vector<16x128xf32>
    %19 = math.exp %18 : vector<16x128xf32>
    %cst_8 = arith.constant 1.000000e+00 : f32
    %20 = vector.broadcast %cst_8 : f32 to vector<16x128xf32>
    %21 = arith.subf %20, %19 : vector<16x128xf32>
    %22 = arith.mulf %21, %21 : vector<16x128xf32>
    %23 = arith.mulf %6, %22 : vector<16x128xf32>
    %24 = arith.mulf %23, %16 : vector<16x128xf32>
    %25 = vector.shape_cast %24 : vector<16x128xf32> to vector<2x8x128xf32>
    %cst_9 = arith.constant dense<0.000000e+00> : vector<8x128xf32>
    %26 = vector.multi_reduction <add>, %25, %cst_9 [0] : vector<2x8x128xf32> to vector<8x128xf32>
    %c0_10 = arith.constant 0 : index
    %c0_11 = arith.constant 0 : index
    %c0_12 = arith.constant 0 : index
    %27 = vector.load %arg3[%c0_10, %c0_11, %c0_12] : memref<1x8x128xf32, #tpu.memory_space<vmem>>, vector<1x8x128xf32>
    %28 = vector.shape_cast %27 : vector<1x8x128xf32> to vector<8x128xf32>
    %29 = vector.shape_cast %26 : vector<8x128xf32> to vector<1x8x128xf32>
    tpu.vector_store %arg3[%c0_10, %c0_11, %c0_12], %29 {strides = array<i32>} : memref<1x8x128xf32, #tpu.memory_space<vmem>>, vector<1x8x128xf32>,
    return
  }
  func.func @transform_0(%arg0: i32) -> (i32, i32) {
    %c0_i32 = arith.constant 0 : i32
    %c0_i32_0 = arith.constant 0 : i32
    return %arg0, %c0_i32 : i32, i32
  }
  func.func @transform_1(%arg0: i32) -> (i32, i32) {
    %c0_i32 = arith.constant 0 : i32
    %c0_i32_0 = arith.constant 0 : i32
    return %arg0, %c0_i32 : i32, i32
  }
  func.func @transform_2(%arg0: i32) -> (i32, i32, i32) {
    %c0_i32 = arith.constant 0 : i32
    %c0_i32_0 = arith.constant 0 : i32
    %c0_i32_1 = arith.constant 0 : i32
    return %arg0, %c0_i32, %c0_i32_0 : i32, i32, i32
  }
}

</mosaic_0001>

<llo_original>
// kernel: tpu_custom_call.1
$region0: #{tpu_custom_call.1}
  #allocation0 [shape = 'u32[]', space=smem, size = 0x4, offset = 0x4, fixed_abs, tag = 'smem constant byte address 0x4 - core index']
  #allocation1 [shape = 'u32[144,128]{1,0:T(1,128)}', space=vmem, size = 0x12000, scoped, tag = 'internal scratch']
  %s0 = inlined_call_operand.hbm [shape: f32[16,128], index: 0, kind: input, shape index: {}]
  %s1 = inlined_call_operand.hbm [shape: f32[16,128], index: 1, kind: input, shape index: {}]
  %s2 = inlined_call_operand.hbm [shape: f32[1,8,128], index: 2, kind: output, shape index: {}]
  %s3 = sld [smem:[#allocation0]]
  $region26: #{tpu_custom_call.1} parent=0
    _
  %s5 = ssub.s32 1, %s3
  %s6 = scalar_select 0, %s5, %s3
  $region1: #{tpu_custom_call.1} parent=0
    #allocation2 [shape = 'u8[8192]{0}', space=vmem, size = 0x2000, scoped, tag = 'input window, operand 0, single buffered']
    #allocation3 [shape = 's32[1]{0}', space=sflag, size = 0x4, scoped, tag = 'scoped memory for tpu_custom_call.1']
    #allocation4 [shape = 's32[1]{0}', space=sflag, size = 0x4, scoped, tag = 'scoped memory for tpu_custom_call.1']
    #allocation5 [shape = 'u8[8192]{0}', space=vmem, size = 0x2000, scoped, tag = 'input window, operand 1, single buffered']
    #allocation6 [shape = 's32[1]{0}', space=sflag, size = 0x4, scoped, tag = 'scoped memory for tpu_custom_call.1']
    #allocation7 [shape = 'u8[4096]{0}', space=vmem, size = 0x1000, scoped, tag = 'output window, operand 0, single buffered']
    %7 = vsyncpa [#allocation3], 0
    %8 = vsyncpa [#allocation6], 0
    %9 = vsyncpa [#allocation4], 0
    // Predicated region
    $region2: #{tpu_custom_call.1} parent=1 // pred_check
      _
    $region3: #{tpu_custom_call.1} parent=1 // pred_check_branch
      %11 = sbr.rel (0) target = $region5
    $region4: #{tpu_custom_call.1} parent=1 // pred_region
      %s13 = ssub.s32 256, 256
      %14 = vsyncadd [#allocation3], %s13
      %s15 = sshll.u32 [#allocation2], 4
      %s16 = int_to_ptr.vmem [resolvable:$true] %s15
      %21 = dma.hbm_to_vmem [thread:$0]  %s0, 256, %s16, [#allocation3], 128, 128, 8
    $region5: #{tpu_custom_call.1} parent=1 // pred_fallthru
      _
    // Predicated region
    $region6: #{tpu_custom_call.1} parent=1 // pred_check
      _
    $region7: #{tpu_custom_call.1} parent=1 // pred_check_branch
      %23 = sbr.rel (0) target = $region9
    $region8: #{tpu_custom_call.1} parent=1 // pred_region
      %s25 = ssub.s32 256, 256
      %26 = vsyncadd [#allocation6], %s25
      %s27 = sshll.u32 [#allocation5], 4
      %s28 = int_to_ptr.vmem [resolvable:$true] %s27
      %33 = dma.hbm_to_vmem [thread:$0]  %s1, 256, %s28, [#allocation6], 128, 128, 8
    $region9: #{tpu_custom_call.1} parent=1 // pred_fallthru
      _
    // Predicated region
    $region10: #{tpu_custom_call.1} parent=1 // pred_check
      _
    $region11: #{tpu_custom_call.1} parent=1 // pred_check_branch
      %35 = sbr.rel (0) target = $region13
    $region12: #{tpu_custom_call.1} parent=1 // pred_region
      %36 = dma.done [#allocation3], 256
    $region13: #{tpu_custom_call.1} parent=1 // pred_fallthru
      _
    // Predicated region
    $region14: #{tpu_custom_call.1} parent=1 // pred_check
      _
    $region15: #{tpu_custom_call.1} parent=1 // pred_check_branch
      %38 = sbr.rel (0) target = $region17
    $region16: #{tpu_custom_call.1} parent=1 // pred_region
      %39 = dma.done [#allocation6], 256
    $region17: #{tpu_custom_call.1} parent=1 // pred_fallthru
      _
    %v40 = vld [vmem:[#allocation2] sm:$0xff]
    %v41 = vld [vmem:[#allocation2 + $0x8] sm:$0xff]
    %v42 = vld [vmem:[#allocation5] sm:$0xff]
    %v43 = vld [vmem:[#allocation5 + $0x8] sm:$0xff]
    %vm44 = vcmp.gt.f32.partialorder %v42, 0.5
    %vm45 = vcmp.gt.f32.partialorder %v43, 0.5
    %v46 = vsel %vm44, 8.0, 0.8
    %v47 = vsel %vm45, 8.0, 0.8
    %v48 = vmax.f32 %v40, 0.0
    %v49 = vmax.f32 %v41, 0.0
    %v50 = vmul.f32 %v40, %v42
    %v51 = vmul.f32 %v41, %v43
    %v52 = vsub.f32 %v48, %v50
    %v53 = vsub.f32 %v49, %v51
    %v54 = vand.u32 2147483647, %v40
    %v55 = vand.u32 2147483647, %v41
    %v56 = vsub.f32 0.0, %v54
    %v57 = vsub.f32 0.0, %v55
    %v58 = vmul.f32 %v56, 1.442695
    %v59 = vpow.pop %v58
    %v60 = vmul.f32 %v57, 1.442695
    %v61 = vpow.pop %v60
    %v62 = vadd.f32 %v59, 1.0
    %v63 = vlog2.pop %v62
    %v64 = vmul.f32 %v63, 0.6931472
    %v65 = vmul.f32 -0.5, %v59
    %v66 = vadd.f32 %v65, 1.0
    %v67 = vmul.f32 %v66, %v59
    %v68 = vand.u32 2147483647, %v59
    %vm69 = vcmp.lt.f32.partialorder %v68, 0.0004427343
    %v70 = vsel %vm69, %v67, %v64
    %v71 = vadd.f32 %v61, 1.0
    %v72 = vlog2.pop %v71
    %v73 = vmul.f32 %v72, 0.6931472
    %v74 = vmul.f32 -0.5, %v61
    %v75 = vadd.f32 %v74, 1.0
    %v76 = vmul.f32 %v75, %v61
    %v77 = vand.u32 2147483647, %v61
    %vm78 = vcmp.lt.f32.partialorder %v77, 0.0004427343
    %v79 = vsel %vm78, %v76, %v73
    %v80 = vadd.f32 %v52, %v70
    %v81 = vadd.f32 %v53, %v79
    %v82 = vsub.f32 0.0, %v80
    %v83 = vsub.f32 0.0, %v81
    %v84 = vmul.f32 %v82, 1.442695
    %v85 = vpow.pop %v84
    %v86 = vmul.f32 %v83, 1.442695
    %v87 = vpow.pop %v86
    %v88 = vsub.f32 1.0, %v85
    %v89 = vsub.f32 1.0, %v87
    %v90 = vmul.f32 %v88, %v88
    %v91 = vmul.f32 %v89, %v89
    %v92 = vmul.f32 %v46, %v90
    %v93 = vmul.f32 %v47, %v91
    %v94 = vmul.f32 %v92, %v80
    %v95 = vmul.f32 %v93, %v81
    %v96 = vadd.f32 %v94, %v95
    %97 = vst [vmem:[#allocation7] sm:$0xff] %v96
    // Predicated region
    $region18: #{tpu_custom_call.1} parent=1 // pred_check
      _
    $region19: #{tpu_custom_call.1} parent=1 // pred_check_branch
      %99 = sbr.rel (0) target = $region21
    $region20: #{tpu_custom_call.1} parent=1 // pred_region
      %s101 = ssub.s32 128, 128
      %102 = vsyncadd [#allocation4], %s101
      %s104 = sshll.u32 [#allocation7], 4
      %s105 = int_to_ptr.vmem [resolvable:$true] %s104
      %107 = dma.vmem_to_hbm [thread:$0]  %s105, 128, %s2, [#allocation4]
    $region21: #{tpu_custom_call.1} parent=1 // pred_fallthru
      _
    // Predicated region
    $region22: #{tpu_custom_call.1} parent=1 // pred_check
      _
    $region23: #{tpu_custom_call.1} parent=1 // pred_check_branch
      %109 = sbr.rel (0) target = $region25
    $region24: #{tpu_custom_call.1} parent=1 // pred_region
      %110 = dma.done [#allocation4], 128
    $region25: #{tpu_custom_call.1} parent=1 // pred_fallthru
      _
    %111 = vsyncpa [#allocation3], 1
    %112 = vsyncpa [#allocation6], 1
    %113 = vsyncpa [#allocation4], 1

</llo_original>
